<compile_context>
chip_gen: v5e
topology: v5e:2x2
jax: 0.10.0
libtpu: 0.0.40
codegen_flags: <defaults>
</compile_context>

<pallas_src>
import functools

import jax
import jax.numpy as jnp
from jax import lax
from jax.experimental import pallas as pl
from jax.experimental.pallas import tpu as pltpu


def _lrn_kernel(*refs, local_size, alpha, beta, use_band):
    if use_band:
        band_ref, x_ref, o_ref = refs
    else:
        x_ref, o_ref = refs

    x = x_ref[...].astype(jnp.float32)         # (C, T) lane-dense block
    x2 = x * x
    C = x.shape[0]

    if local_size > 1:
        if use_band:
            # Channel-window average on the MXU:
            #   avg[c, t] = sum_j band[c, j] * x2[j, t]
            avg = jnp.dot(band_ref[...], x2, preferred_element_type=jnp.float32)
        else:
            # Value-level fallback (only for very large C where a (C, C) band
            # matrix would not fit comfortably in VMEM).
            pad_l = (local_size - 1) // 2
            pad_r = local_size - 1 - pad_l
            x2p = jnp.pad(x2, ((pad_l, pad_r), (0, 0)))
            acc = x2p[0:C]
            for j in range(1, local_size):
                acc = acc + x2p[j:j + C]
            avg = acc * (1.0 / float(local_size))
    else:
        avg = x2                               # window of 1 == x^2 itself

    base = 1.0 + alpha * avg                   # >= 1 for alpha >= 0
    if abs(beta - 0.75) < 1e-12:
        r = lax.rsqrt(base)                    # base^-1/2
        scale = r * jnp.sqrt(r)                # base^-3/4  (cheaper than pow)
    elif abs(beta - 0.5) < 1e-12:
        scale = lax.rsqrt(base)
    else:
        scale = jnp.power(base, -beta)         # out = x * base^-beta == x / base^beta

    o_ref[...] = (x * scale).astype(o_ref.dtype)


def _vmem_budget():
    """Per-generation (max block bytes, vmem_limit_bytes)."""
    cap = None
    try:
        cap = getattr(pltpu.get_tpu_info(), "vmem_capacity_bytes", None)
    except Exception:
        cap = None
    if cap is not None and cap >= 100 * 1024 * 1024:      # v5e / v6e: 128 MiB VMEM
        return 6 * 1024 * 1024, 64 * 1024 * 1024
    # v7x (64 MiB VMEM per TC) or unknown: conservative budget.
    return 3 * 1024 * 1024, 40 * 1024 * 1024


def _pick_spatial_tile(hw_pad, c, n_batch, max_block_bytes, elem_bytes=4):
    """Largest lane-dense (multiple-of-128) divisor of hw_pad within budget."""
    candidates = [t for t in range(128, hw_pad + 1, 128)
                  if hw_pad % t == 0 and c * t * elem_bytes <= max_block_bytes]
    if not candidates:
        return 128
    tile = max(candidates)
    # Keep >= 2 total grid steps so both v7x TensorCores get work and the
    # pipeline has something to overlap with.
    if n_batch * (hw_pad // tile) < 2:
        split = [t for t in candidates if hw_pad // t >= 2]
        if split:
            tile = max(split)
    return tile


def lrn(x, local_size=1, alpha=1.0, beta=0.75):
    """Across-channels LRN. x: (N, C, H, W)."""
    N, C, H, W = x.shape
    HW = H * W
    HW_pad = ((HW + 127) // 128) * 128
    x3 = x.reshape(N, C, HW)
    if HW_pad != HW:
        # Lane-dense padding: unmasked stores in the kernel; padded spatial
        # columns never interact with real ones (window is over channels).
        x3 = jnp.pad(x3, ((0, 0), (0, 0), (0, HW_pad - HW)))

    max_block_bytes, vmem_limit = _vmem_budget()
    tile = _pick_spatial_tile(HW_pad, C, N, max_block_bytes)
    n_sp = HW_pad // tile

    use_band = (local_size > 1) and (C * C * 4 <= 8 * 1024 * 1024)

    kernel = functools.partial(
        _lrn_kernel, local_size=int(local_size), alpha=float(alpha),
        beta=float(beta), use_band=use_band)

    x_spec = pl.BlockSpec((pl.Squeezed(), C, tile), lambda n, s: (n, 0, s))
    in_specs = [x_spec]
    args = [x3]
    if use_band:
        # band[c, j] = 1/size for c - pad_l <= j <= c + pad_r (AvgPool3d,
        # count_include_pad semantics: always divide by local_size).
        pad_l = (local_size - 1) // 2
        pad_r = local_size - 1 - pad_l
        diff = jnp.arange(C)[None, :] - jnp.arange(C)[:, None]     # j - c
        band = (((diff >= -pad_l) & (diff <= pad_r)).astype(jnp.float32)
                * (1.0 / float(local_size)))
        # Constant index_map -> block never changes, stays VMEM-resident.
        in_specs = [pl.BlockSpec((C, C), lambda n, s: (0, 0))] + in_specs
        args = [band] + args

    out3 = pl.pallas_call(
        kernel,
        out_shape=jax.ShapeDtypeStruct((N, C, HW_pad), x.dtype),
        grid_spec=pltpu.PrefetchScalarGridSpec(
            num_scalar_prefetch=0,
            grid=(N, n_sp),
            in_specs=in_specs,
            out_specs=pl.BlockSpec((pl.Squeezed(), C, tile),
                                   lambda n, s: (n, 0, s)),
        ),
        compiler_params=pltpu.CompilerParams(
            dimension_semantics=("parallel", "parallel"),
            vmem_limit_bytes=vmem_limit,
        ),
    )(*args)

    return out3[:, :, :HW].reshape(N, C, H, W)


def _lrn_ref(x, local_size=1, alpha=1.0, beta=0.75):
    """Pure-JAX reference mirroring the PyTorch forward (pow then divide)."""
    x32 = x.astype(jnp.float32)
    x2 = x32 * x32
    pad_l = (local_size - 1) // 2
    pad_r = local_size - 1 - pad_l
    x2p = jnp.pad(x2, ((0, 0), (pad_l, pad_r), (0, 0), (0, 0)))
    C = x.shape[1]
    acc = sum(x2p[:, j:j + C] for j in range(local_size))
    div = jnp.power(1.0 + alpha * acc / local_size, beta)
    return (x32 / div).astype(x.dtype)


if __name__ == "__main__":
    key = jax.random.PRNGKey(0)
    x = jax.random.normal(key, (2, 4, 16, 16), dtype=jnp.float32)

    # Module defaults: local_size=1, alpha=1.0, beta=0.75, ACROSS_CHANNELS=True
    out = lrn(x, local_size=1, alpha=1.0, beta=0.75)
    jax.block_until_ready(out)
    ref = _lrn_ref(x, local_size=1, alpha=1.0, beta=0.75)
    assert jnp.allclose(out, ref, atol=1e-5, rtol=1e-5)

    # Non-trivial channel window (odd local_size) -> banded-MXU path.
    out3 = lrn(x, local_size=3, alpha=1e-4, beta=0.75)
    jax.block_until_ready(out3)
    ref3 = _lrn_ref(x, local_size=3, alpha=1e-4, beta=0.75)
    assert jnp.allclose(out3, ref3, atol=1e-5, rtol=1e-5)

    # Spatial size not 128-aligned -> lane-dense padding path.
    x_odd = jax.random.normal(jax.random.PRNGKey(1), (2, 4, 6, 10), jnp.float32)
    out5 = lrn(x_odd, local_size=5, alpha=2e-4, beta=0.75)
    jax.block_until_ready(out5)
    ref5 = _lrn_ref(x_odd, local_size=5, alpha=2e-4, beta=0.75)
    assert jnp.allclose(out5, ref5, atol=1e-5, rtol=1e-5)

    # Non-default beta exercises the general pow path.
    out7 = lrn(x, local_size=3, alpha=1e-3, beta=0.6)
    jax.block_until_ready(out7)
    ref7 = _lrn_ref(x, local_size=3, alpha=1e-3, beta=0.6)
    assert jnp.allclose(out7, ref7, atol=1e-5, rtol=1e-5)

    print("KERNEL_OK")
</pallas_src>

<mosaic_0001>
module attributes {stable_mosaic.version = 11 : i64} {
  func.func @_lrn_kernel(%arg0: i32, %arg1: i32, %arg2: memref<1x4x256xf32, #tpu.memory_space<vmem>>, %arg3: memref<1x4x256xf32, #tpu.memory_space<vmem>>) attributes {dimension_semantics = [#tpu.dimension_semantics<parallel>, #tpu.dimension_semantics<parallel>], iteration_bounds = array<i64: 2, 1>, scalar_prefetch = 0 : i64, scratch_operands = 0 : i64, tpu.core_type = #tpu.core_type<tc>, window_params = [{transform_indices = @transform_0, window_bounds = array<i64: 1, 4, 256>}, {transform_indices = @transform_1, window_bounds = array<i64: 1, 4, 256>}]} {
    %c0 = arith.constant 0 : index
    %c0_0 = arith.constant 0 : index
    %c0_1 = arith.constant 0 : index
    %0 = vector.load %arg2[%c0, %c0_0, %c0_1] : memref<1x4x256xf32, #tpu.memory_space<vmem>>, vector<1x4x256xf32>
    %1 = vector.shape_cast %0 : vector<1x4x256xf32> to vector<4x256xf32>
    %2 = arith.mulf %1, %1 : vector<4x256xf32>
    %cst = arith.constant 1.000000e+00 : f32
    %3 = vector.broadcast %cst : f32 to vector<4x256xf32>
    %4 = arith.mulf %3, %2 : vector<4x256xf32>
    %cst_2 = arith.constant 1.000000e+00 : f32
    %5 = vector.broadcast %cst_2 : f32 to vector<4x256xf32>
    %6 = arith.addf %5, %4 : vector<4x256xf32>
    %7 = math.rsqrt %6 : vector<4x256xf32>
    %8 = math.sqrt %7 : vector<4x256xf32>
    %9 = arith.mulf %7, %8 : vector<4x256xf32>
    %10 = arith.mulf %1, %9 : vector<4x256xf32>
    %c0_3 = arith.constant 0 : index
    %c0_4 = arith.constant 0 : index
    %c0_5 = arith.constant 0 : index
    %11 = vector.load %arg3[%c0_3, %c0_4, %c0_5] : memref<1x4x256xf32, #tpu.memory_space<vmem>>, vector<1x4x256xf32>
    %12 = vector.shape_cast %11 : vector<1x4x256xf32> to vector<4x256xf32>
    %13 = vector.shape_cast %10 : vector<4x256xf32> to vector<1x4x256xf32>
    tpu.vector_store %arg3[%c0_3, %c0_4, %c0_5], %13 {strides = array<i32>} : memref<1x4x256xf32, #tpu.memory_space<vmem>>, vector<1x4x256xf32>,
    return
  }
  func.func @transform_0(%arg0: i32, %arg1: i32) -> (i32, i32, i32) {
    %c0_i32 = arith.constant 0 : i32
    %c0_i32_0 = arith.constant 0 : i32
    return %arg0, %c0_i32, %arg1 : i32, i32, i32
  }
  func.func @transform_1(%arg0: i32, %arg1: i32) -> (i32, i32, i32) {
    %c0_i32 = arith.constant 0 : i32
    %c0_i32_0 = arith.constant 0 : i32
    return %arg0, %c0_i32, %arg1 : i32, i32, i32
  }
}

</mosaic_0001>

<llo_original>
// kernel: tpu_custom_call.1
$region0: #{tpu_custom_call.1}
  #allocation0 [shape = 'u32[]', space=smem, size = 0x4, offset = 0x4, fixed_abs, tag = 'smem constant byte address 0x4 - core index']
  #allocation1 [shape = 'u32[72,128]{1,0:T(1,128)}', space=vmem, size = 0x9000, scoped, tag = 'internal scratch']
  %s0 = inlined_call_operand.hbm [shape: f32[2,4,256], index: 0, kind: input, shape index: {}]
  %s1 = inlined_call_operand.hbm [shape: f32[2,4,256], index: 1, kind: output, shape index: {}]
  %s2 = sld [smem:[#allocation0]]
  $region41: #{tpu_custom_call.1} parent=0
    _
  %s4 = ssub.s32 1, %s2
  %s5 = scalar_select 0, %s4, %s2
  $region1: #{tpu_custom_call.1} parent=0
    #allocation2 [shape = 'u8[8192]{0}', space=vmem, size = 0x2000, scoped, tag = 'input window, operand 0']
    #allocation3 [shape = 's32[2]{0}', space=sflag, size = 0x8, scoped, tag = 'scoped memory for tpu_custom_call.1']
    #allocation4 [shape = 's32[2]{0}', space=sflag, size = 0x8, scoped, tag = 'scoped memory for tpu_custom_call.1']
    #allocation5 [shape = 'u8[8192]{0}', space=vmem, size = 0x2000, scoped, tag = 'output window, operand 0']
    %6 = vsyncpa [#allocation3], 0
    %s7 = scalar_lea.sflag [#allocation3], 1
    %8 = vsyncpa %s7, 0
    %9 = vsyncpa [#allocation4], 0
    %s10 = scalar_lea.sflag [#allocation4], 1
    %11 = vsyncpa %s10, 0
    loop: start=0, step=1, limit=4
    $region2: #{tpu_custom_call.1} parent=1 // loop_pre_header
      _
    $region3: #{tpu_custom_call.1} parent=1 // loop_header
      %s13 = sphi 0, %s17
      %p14 = scmp.ge.s32.totalorder %s13, 4
      %s20 = sphi 0, %s32
      %s21 = sphi 0, %s28
      %s22 = sphi 0, %s20
      %s23 = sphi 0, %s21
      %s24 = sphi 0, %s22
      %s25 = sphi 0, %s23
      %s37 = sphi 0, %s39
      %s40 = sphi 0, %s37
      %s41 = sphi 0, %s40
      %s57 = sphi 0, %s41
      %s65 = sphi 0, %s67
      %s68 = sphi 0, %s65
      %s69 = sphi 0, %s68
      %s85 = sphi 0, %s69
    $region4: #{tpu_custom_call.1} parent=1 // loop_header_branch
      %16 = sbr.rel (%p14) target = $region8
    $region5: #{tpu_custom_call.1} parent=1 // loop_body
      %s18 = ssub.s32 %s13, 1
      %s19 = ssub.s32 %s13, 2
      %s26 = sadd.s32 1, %s21
      %p27 = scmp.ge.s32.totalorder %s26, 1
      %s28 = scalar_select %p27, 0, %s26
      %s29 = sadd.s32 1, %s20
      %s30 = scalar_select %p27, %s29, %s20
      %p31 = scmp.ge.s32.totalorder %s30, 2
      %s32 = scalar_select %p31, 0, %s30
      %s33 = ssub.s32 %s20, %s32
      %s34 = ssub.s32 %s21, %s28
      %s35 = sor.u32 %s33, %s34
      %p36 = scmp.eq.s32.totalorder %s35, 0
      %s38 = sadd.s32 %s37, 1
      %s39 = scalar_select %p36, %s37, %s38
      %p42 = pneg %p36
      %p43 = scmp.eq.s32.totalorder %s13, 1
      %p44 = por %p42, %p43
      %p45 = scmp.ne.s32.totalorder %s37, %s40
      %p46 = scmp.eq.s32.totalorder %s13, 0
      %p47 = por %p45, %p46
      %p48 = scmp.ne.s32.totalorder %s37, %s40
      %p49 = scmp.eq.s32.totalorder %s18, 1
      %p50 = por %p48, %p49
      %p51 = scmp.ne.s32.totalorder %s40, %s41
      %p52 = scmp.eq.s32.totalorder %s18, 0
      %p53 = por %p51, %p52
      %p54 = scmp.ne.s32.totalorder %s40, %s41
      %p55 = scmp.eq.s32.totalorder %s19, 1
      %p56 = por %p54, %p55
      %p58 = scmp.ne.s32.totalorder %s41, %s57
      %p59 = scmp.eq.s32.totalorder %s19, 0
      %p60 = por %p58, %p59
      %s61 = ssub.s32 %s20, %s32
      %s62 = ssub.s32 %s21, %s28
      %s63 = sor.u32 %s61, %s62
      %p64 = scmp.eq.s32.totalorder %s63, 0
      %s66 = sadd.s32 %s65, 1
      %s67 = scalar_select %p64, %s65, %s66
      %p70 = pneg %p64
      %p71 = scmp.eq.s32.totalorder %s13, 1
      %p72 = por %p70, %p71
      %p73 = scmp.ne.s32.totalorder %s65, %s68
      %p74 = scmp.eq.s32.totalorder %s13, 0
      %p75 = por %p73, %p74
      %p76 = scmp.ne.s32.totalorder %s65, %s68
      %p77 = scmp.eq.s32.totalorder %s18, 1
      %p78 = por %p76, %p77
      %p79 = scmp.ne.s32.totalorder %s68, %s69
      %p80 = scmp.eq.s32.totalorder %s18, 0
      %p81 = por %p79, %p80
      %p82 = scmp.ne.s32.totalorder %s68, %s69
      %p83 = scmp.eq.s32.totalorder %s19, 1
      %p84 = por %p82, %p83
      %p86 = scmp.ne.s32.totalorder %s69, %s85
      %p87 = scmp.eq.s32.totalorder %s19, 0
      %p88 = por %p86, %p87
      %p89 = scmp.le.s32.totalorder 1, %s13
      %p90 = scmp.lt.s32.totalorder %s13, 3
      %p91 = pnand %p89, %p90
      %p92 = pneg %p91
      // Predicated region
      $region9: #{tpu_custom_call.1} parent=5 // pred_check
        _
      $region10: #{tpu_custom_call.1} parent=5 // pred_check_branch
        %94 = sbr.rel (%p91) target = $region12
      $region11: #{tpu_custom_call.1} parent=5 // pred_region
        %s95 = ssub.s32 %s13, 1
      $region12: #{tpu_custom_call.1} parent=5 // pred_fallthru
        _
      %p96 = scmp.lt.s32.totalorder %s13, 2
      // Predicated region
      $region13: #{tpu_custom_call.1} parent=5 // pred_check
        %p97 = pneg %p96
      $region14: #{tpu_custom_call.1} parent=5 // pred_check_branch
        %99 = sbr.rel (%p97) target = $region16
      $region15: #{tpu_custom_call.1} parent=5 // pred_region
        // Predicated region
        $region17: #{tpu_custom_call.1} parent=15 // pred_check
          %p100 = pneg %p47
        $region18: #{tpu_custom_call.1} parent=15 // pred_check_branch
          %102 = sbr.rel (%p100) target = $region20
        $region19: #{tpu_custom_call.1} parent=15 // pred_region
          %s103 = sand.u32 %s37, 1
          %s104 = scalar_lea.sflag [#allocation3], %s103
          %s105 = sand.u32 %s37, 1
          %s106 = smul.addr %s105, 8
          %s107 = scalar_lea.vmem [#allocation2], %s106
          %s108 = smul.u32 2, %s21
          %110 = vsyncadd %s104, 0
          %s111 = smul.addr %s20, 2
          %s112 = sadd.s32 %s108, %s111
          %s113 = smul.addr %s112, 4
          %s114 = scalar_lea.hbm %s0, %s113
          %s116 = sshll.u32 %s114, 4
          %s117 = int_to_ptr.hbm [resolvable:$true] %s116
          %s118 = sshll.u32 %s107, 4
          %s119 = int_to_ptr.vmem [resolvable:$true] %s118
          %121 = dma.hbm_to_vmem [thread:$0]  %s117, 128, %s119, %s104
        $region20: #{tpu_custom_call.1} parent=15 // pred_fallthru
          _
      $region16: #{tpu_custom_call.1} parent=5 // pred_fallthru
        _
      %p122 = scmp.le.s32.totalorder 1, %s13
      %p123 = scmp.lt.s32.totalorder %s13, 3
      %p124 = pnand %p122, %p123
      %p125 = pneg %p124
      // Predicated region
      $region21: #{tpu_custom_call.1} parent=5 // pred_check
        _
      $region22: #{tpu_custom_call.1} parent=5 // pred_check_branch
        %127 = sbr.rel (%p124) target = $region24
      $region23: #{tpu_custom_call.1} parent=5 // pred_region
        %s128 = ssub.s32 %s13, 1
        %s129 = sand.u32 %s40, 1
        %s130 = scalar_lea.sflag [#allocation3], %s129
        %s131 = sand.u32 %s40, 1
        %s132 = smul.addr %s131, 8
        %s133 = scalar_lea.vmem [#allocation2], %s132
        // Predicated region
        $region25: #{tpu_custom_call.1} parent=23 // pred_check
          %p134 = pneg %p53
        $region26: #{tpu_custom_call.1} parent=23 // pred_check_branch
          %136 = sbr.rel (%p134) target = $region28
        $region27: #{tpu_custom_call.1} parent=23 // pred_region
          %138 = dma.done %s130, 128
        $region28: #{tpu_custom_call.1} parent=23 // pred_fallthru
          _
        %s139 = sand.u32 %s40, 1
        %s140 = scalar_lea.sflag [#allocation3], %s139
        %s141 = sand.u32 %s40, 1
        %s142 = smul.addr %s141, 8
        %s143 = scalar_lea.vmem [#allocation2], %s142
        %p144 = pneg %p53
        %p145 = pneg %p50
        %p146 = pneg %p81
        %p147 = pneg %p78
        %s148 = sand.u32 %s68, 1
        %s149 = scalar_lea.sflag [#allocation4], %s148
        %s150 = sand.u32 %s68, 1
        %s151 = smul.addr %s150, 8
        %s152 = scalar_lea.vmem [#allocation5], %s151
        %s153 = smul.u32 2, %s23
        %s154 = smul.u32 2, %s23
        %v155 = vld [vmem:[%s133] sm:$0xff]
        %v156 = vmul.f32 %v155, %v155
        %v157 = vadd.f32 %v156, 1.0
        %v158 = vrsqrt.pop %v157
        %v159 = vmul.f32 %v158, %v157
        %v160 = vmul.f32 %v159, %v158
        %v161 = vmul.f32 0.5, %v160
        %v162 = vsub.f32 1.5, %v161
        %v163 = vmul.f32 %v158, %v162
        %vm164 = vweird.f32 %v157
        %vm165 = vweird.f32 %v158
        %vm166 = vmor %vm164, %vm165
        %v167 = vsel %vm166, %v158, %v163
        %v168 = vrsqrt.pop %v167
        %v169 = vmul.f32 %v168, %v167
        %v170 = vmul.f32 %v169, %v168
        %v171 = vmul.f32 0.5, %v170
        %v172 = vsub.f32 1.5, %v171
        %v173 = vmul.f32 %v168, %v172
        %v174 = vmul.f32 %v167, %v173
        %vm175 = vcmp.eq.f32.partialorder %v167, inf
        %v176 = vsel %vm175, %v167, %v174
        %vm177 = vcmp.eq.f32.partialorder %v167, 0.0
        %v178 = vand.u32 %v167, 2147483648
        %v179 = vsel %vm177, %v178, %v176
        %v180 = vmul.f32 %v167, %v179
        %v181 = vmul.f32 %v155, %v180
        %182 = vst [vmem:[%s152] sm:$0xff] %v181
        %s183 = sand.u32 %s68, 1
        %s184 = scalar_lea.sflag [#allocation4], %s183
        %s185 = sand.u32 %s68, 1
        %s186 = smul.addr %s185, 8
        %s187 = scalar_lea.vmem [#allocation5], %s186
        // Predicated region
        $region29: #{tpu_custom_call.1} parent=23 // pred_check
          %p188 = pneg %p78
        $region30: #{tpu_custom_call.1} parent=23 // pred_check_branch
          %190 = sbr.rel (%p188) target = $region32
        $region31: #{tpu_custom_call.1} parent=23 // pred_region
          %s191 = smul.u32 2, %s23
          %193 = vsyncadd %s184, 0
          %s194 = smul.addr %s22, 2
          %s195 = sadd.s32 %s191, %s194
          %s196 = smul.addr %s195, 4
          %s197 = scalar_lea.hbm %s1, %s196
          %s199 = sshll.u32 %s187, 4
          %s200 = int_to_ptr.vmem [resolvable:$true] %s199
          %s201 = sshll.u32 %s197, 4
          %s202 = int_to_ptr.hbm [resolvable:$true] %s201
          %204 = dma.vmem_to_hbm [thread:$0]  %s200, 128, %s202, %s184
        $region32: #{tpu_custom_call.1} parent=23 // pred_fallthru
          _
      $region24: #{tpu_custom_call.1} parent=5 // pred_fallthru
        _
      %p205 = scmp.le.s32.totalorder 2, %s13
      // Predicated region
      $region33: #{tpu_custom_call.1} parent=5 // pred_check
        %p206 = pneg %p205
      $region34: #{tpu_custom_call.1} parent=5 // pred_check_branch
        %208 = sbr.rel (%p206) target = $region36
      $region35: #{tpu_custom_call.1} parent=5 // pred_region
        %s209 = ssub.s32 %s13, 2
        // Predicated region
        $region37: #{tpu_custom_call.1} parent=35 // pred_check
          %p210 = pneg %p84
        $region38: #{tpu_custom_call.1} parent=35 // pred_check_branch
          %212 = sbr.rel (%p210) target = $region40
        $region39: #{tpu_custom_call.1} parent=35 // pred_region
          %s213 = sand.u32 %s69, 1
          %s214 = scalar_lea.sflag [#allocation4], %s213
          %s215 = sand.u32 %s69, 1
          %s216 = smul.addr %s215, 8
          %s217 = scalar_lea.vmem [#allocation5], %s216
          %219 = dma.done %s214, 128
        $region40: #{tpu_custom_call.1} parent=35 // pred_fallthru
          _
      $region36: #{tpu_custom_call.1} parent=5 // pred_fallthru
        _
    $region6: #{tpu_custom_call.1} parent=1 // loop_footer
      %s17 = sadd.s32 1, %s13
    $region7: #{tpu_custom_call.1} parent=1 // loop_footer_branch
      %12 = sbr.rel target = $region3
    $region8: #{tpu_custom_call.1} parent=1 // loop_exit
      _
    %220 = vsyncpa [#allocation3], 1
    %s221 = scalar_lea.sflag [#allocation3], 1
    %222 = vsyncpa %s221, 1
    %223 = vsyncpa [#allocation4], 1
    %s224 = scalar_lea.sflag [#allocation4], 1
    %225 = vsyncpa %s224, 1

</llo_original>
